<compile_context>
chip_gen: v7x
topology: tpu7x:2x2x1
jax: 0.10.0
libtpu: 0.0.40
codegen_flags: <defaults>
</compile_context>

<pallas_src>
import functools

import jax
import jax.numpy as jnp
from jax import lax
from jax.experimental import pallas as pl
from jax.experimental.pallas import tpu as pltpu


# ---------------------------------------------------------------------------
# Fused decoder kernel: one-hot embedding gather + L x LSTM cell + FC,
# iterated over a T-step time grid with VMEM-resident weights and state.
# ---------------------------------------------------------------------------
def make_decoder_kernel(num_layers, batch, vocab, emb_size, hidden_size,
                        out_size):
    L, N, V, E, H, O = num_layers, batch, vocab, emb_size, hidden_size, out_size

    def kernel(*refs):
        tok_ref = refs[0]                      # VMEM (N, 1) int32, sliced per t
        emb_ref = refs[1]                      # VMEM (V, E)        resident
        h0_ref = refs[2]                       # VMEM (L, N, H)     resident
        c0_ref = refs[3]                       # VMEM (L, N, H)     resident
        w = refs[4:4 + 3 * L]                  # per layer: w_ih, w_hh, b
        fc_w_ref = refs[4 + 3 * L]             # (H, O)
        fc_b_ref = refs[5 + 3 * L]             # (1, O)
        preds_ref = refs[6 + 3 * L]            # (N, O), sliced per t
        h_out_ref = refs[7 + 3 * L]            # (L, N, H)          resident
        c_out_ref = refs[8 + 3 * L]            # (L, N, H)          resident
        h_state = refs[9 + 3 * L]              # VMEM scratch (L, N, H)
        c_state = refs[10 + 3 * L]             # VMEM scratch (L, N, H)

        t = pl.program_id(0)

        # Load the carried recurrent state once at the first step.
        @pl.when(t == 0)
        def _():
            h_state[...] = h0_ref[...]
            c_state[...] = c0_ref[...]

        # --- embedding lookup as a one-hot MXU matmul (exact in f32) --------
        tok = tok_ref[...]                                      # (N, 1) int32
        iota_v = lax.broadcasted_iota(jnp.int32, (N, V), 1)
        onehot = (iota_v == tok).astype(jnp.float32)            # (N, V)
        layer_in = jnp.dot(onehot, emb_ref[...],
                           preferred_element_type=jnp.float32)  # (N, E)
        # nn.Dropout(embedding) -> identity (inference semantics)

        # --- stacked LSTM, single time-step ----------------------------------
        for l in range(L):
            w_ih_ref = w[3 * l]
            w_hh_ref = w[3 * l + 1]
            b_ref = w[3 * l + 2]
            h_prev = h_state[l]                                 # (N, H)
            c_prev = c_state[l]                                 # (N, H)

            # gates = x @ W_ih + h @ W_hh + (b_ih + b_hh)  -- no lane concat
            gates = (jnp.dot(layer_in, w_ih_ref[...],
                             preferred_element_type=jnp.float32)
                     + jnp.dot(h_prev, w_hh_ref[...],
                               preferred_element_type=jnp.float32)
                     + b_ref[...])                              # (N, 4H)

            # Full-vreg activations, then static lane slices (gate order ifgo).
            sig = jax.nn.sigmoid(gates)
            tnh = jnp.tanh(gates)
            i_g = sig[:, 0 * H:1 * H]
            f_g = sig[:, 1 * H:2 * H]
            g_g = tnh[:, 2 * H:3 * H]
            o_g = sig[:, 3 * H:4 * H]

            c_new = f_g * c_prev + i_g * g_g
            h_new = o_g * jnp.tanh(c_new)

            h_state[l] = h_new
            c_state[l] = c_new
            layer_in = h_new            # inter-layer dropout -> identity

        # --- final linear -----------------------------------------------------
        preds_ref[...] = (jnp.dot(layer_in, fc_w_ref[...],
                                  preferred_element_type=jnp.float32)
                          + fc_b_ref[...])

        # Write the recurrent state back only once, at the last time step.
        @pl.when(t == pl.num_programs(0) - 1)
        def _():
            h_out_ref[...] = h_state[...]
            c_out_ref[...] = c_state[...]

    return kernel


# ---------------------------------------------------------------------------
# Wrappers
# ---------------------------------------------------------------------------
def _decoder_steps(params, tok_seq, hidden, cell):
    """Run T fused decode steps in a single pallas_call (grid over time).

    tok_seq: (T, N) int32; hidden/cell: (L, N, H).
    Returns (predictions (T, N, O), hidden (L, N, H), cell (L, N, H)).
    """
    T, N = tok_seq.shape
    L, _, H = hidden.shape
    V, E = params["embedding"].shape
    O = params["fc_w"].shape[-1]

    def resident(shape):
        # Same block for every t -> DMA'd once, stays VMEM resident.
        return pl.BlockSpec(shape, lambda *_: (0,) * len(shape))

    weight_args, weight_specs = [], []
    for l in range(L):
        for name in (f"w_ih_{l}", f"w_hh_{l}", f"b_{l}"):
            weight_args.append(params[name])
            weight_specs.append(resident(params[name].shape))

    in_specs = (
        [pl.BlockSpec((None, N, 1), lambda t: (t, 0, 0)),   # token ids, per step
         resident((V, E)),                                   # embedding table
         resident((L, N, H)),                                # h0
         resident((L, N, H))]                                # c0
        + weight_specs
        + [resident(params["fc_w"].shape), resident(params["fc_b"].shape)]
    )
    out_specs = (
        pl.BlockSpec((None, N, O), lambda t: (t, 0, 0)),     # per-step predictions
        resident((L, N, H)),                                 # h_out
        resident((L, N, H)),                                 # c_out
    )
    out_shape = (jax.ShapeDtypeStruct((T, N, O), jnp.float32),
                 jax.ShapeDtypeStruct((L, N, H), jnp.float32),
                 jax.ShapeDtypeStruct((L, N, H), jnp.float32))

    grid_spec = pltpu.PrefetchScalarGridSpec(
        num_scalar_prefetch=0,
        grid=(T,),
        in_specs=in_specs,
        out_specs=out_specs,
        scratch_shapes=[pltpu.VMEM((L, N, H), jnp.float32),
                        pltpu.VMEM((L, N, H), jnp.float32)],
    )

    kernel = make_decoder_kernel(L, N, V, E, H, O)
    preds, h_new, c_new = pl.pallas_call(
        kernel,
        grid_spec=grid_spec,
        out_shape=out_shape,
        compiler_params=pltpu.CompilerParams(
            dimension_semantics=("arbitrary",),       # time axis carries state
            vmem_limit_bytes=32 * 1024 * 1024,        # safe on v5e/v6e/v7x
        ),
    )(tok_seq.reshape(T, N, 1).astype(jnp.int32),
      params["embedding"], hidden, cell,
      *weight_args, params["fc_w"], params["fc_b"])
    return preds, h_new, c_new


def decoder_forward(params, x_tokens, hidden, cell):
    """Matches Decoder.forward: x (N,) token ids -> (preds (N, O), h, c)."""
    preds_seq, h_new, c_new = _decoder_steps(params, x_tokens[None, :],
                                             hidden, cell)
    return preds_seq[0], h_new, c_new   # squeeze(0), as in the PyTorch module


# ---------------------------------------------------------------------------
# Deterministic parameter init (PyTorch-style values, kernel-friendly layout)
# ---------------------------------------------------------------------------
def init_params(key, input_size, embedding_size, hidden_size, output_size,
                num_layers):
    params = {}
    keys = jax.random.split(key, 3 + 4 * num_layers)
    k_iter = iter(keys)
    std = 1.0 / float(hidden_size) ** 0.5

    # Lane-dense (V, E) embedding table.
    params["embedding"] = jax.random.normal(
        next(k_iter), (input_size, embedding_size), jnp.float32)

    for l in range(num_layers):
        in_dim = embedding_size if l == 0 else hidden_size
        # Stored transposed vs. PyTorch: (in_dim, 4H) / (H, 4H); gate order ifgo.
        params[f"w_ih_{l}"] = jax.random.uniform(
            next(k_iter), (in_dim, 4 * hidden_size), jnp.float32, -std, std)
        params[f"w_hh_{l}"] = jax.random.uniform(
            next(k_iter), (hidden_size, 4 * hidden_size), jnp.float32, -std, std)
        b_ih = jax.random.uniform(next(k_iter), (4 * hidden_size,),
                                  jnp.float32, -std, std)
        b_hh = jax.random.uniform(next(k_iter), (4 * hidden_size,),
                                  jnp.float32, -std, std)
        params[f"b_{l}"] = (b_ih + b_hh)[None, :]               # (1, 4H)

    params["fc_w"] = jax.random.uniform(
        next(k_iter), (hidden_size, output_size), jnp.float32, -std, std)
    params["fc_b"] = jax.random.uniform(
        next(k_iter), (1, output_size), jnp.float32, -std, std)
    return params


# ---------------------------------------------------------------------------
# Pure-JAX reference (same math, no Pallas) for a correctness smoke-test.
# ---------------------------------------------------------------------------
def decoder_reference(params, x_tokens, hidden, cell):
    L, _, H = hidden.shape
    layer_in = jnp.take(params["embedding"], x_tokens, axis=0)   # (N, E)
    h_list, c_list = [], []
    for l in range(L):
        gates = (layer_in @ params[f"w_ih_{l}"]
                 + hidden[l] @ params[f"w_hh_{l}"]
                 + params[f"b_{l}"])
        i_g = jax.nn.sigmoid(gates[:, 0 * H:1 * H])
        f_g = jax.nn.sigmoid(gates[:, 1 * H:2 * H])
        g_g = jnp.tanh(gates[:, 2 * H:3 * H])
        o_g = jax.nn.sigmoid(gates[:, 3 * H:4 * H])
        c_new = f_g * cell[l] + i_g * g_g
        h_new = o_g * jnp.tanh(c_new)
        h_list.append(h_new)
        c_list.append(c_new)
        layer_in = h_new
    preds = layer_in @ params["fc_w"] + params["fc_b"]
    return preds, jnp.stack(h_list), jnp.stack(c_list)


# ---------------------------------------------------------------------------
if __name__ == "__main__":
    # Small config consistent with the module's __init__/forward.
    input_size = 64        # vocab size
    embedding_size = 32
    hidden_size = 32
    output_size = 64
    num_layers = 2
    batch = 8              # x is an (N,) batch of token ids, one decode step

    key = jax.random.PRNGKey(0)
    k_par, k_tok, k_h, k_c = jax.random.split(key, 4)

    params = init_params(k_par, input_size, embedding_size, hidden_size,
                         output_size, num_layers)

    x_tokens = jax.random.randint(k_tok, (batch,), 0, input_size, jnp.int32)
    hidden = jax.random.normal(k_h, (num_layers, batch, hidden_size), jnp.float32)
    cell = jax.random.normal(k_c, (num_layers, batch, hidden_size), jnp.float32)

    fwd = jax.jit(functools.partial(decoder_forward, params))
    preds, new_hidden, new_cell = fwd(x_tokens, hidden, cell)
    jax.block_until_ready((preds, new_hidden, new_cell))

    assert preds.shape == (batch, output_size)
    assert new_hidden.shape == (num_layers, batch, hidden_size)
    assert new_cell.shape == (num_layers, batch, hidden_size)
    assert bool(jnp.all(jnp.isfinite(preds)))
    assert bool(jnp.all(jnp.isfinite(new_hidden)))
    assert bool(jnp.all(jnp.isfinite(new_cell)))

    # Compare against a pure-JAX reference (loose tol: MXU default precision).
    ref_p, ref_h, ref_c = jax.jit(
        functools.partial(decoder_reference, params))(x_tokens, hidden, cell)
    assert float(jnp.max(jnp.abs(preds - ref_p))) < 5e-2
    assert float(jnp.max(jnp.abs(new_hidden - ref_h))) < 5e-2
    assert float(jnp.max(jnp.abs(new_cell - ref_c))) < 5e-2

    print("KERNEL_OK")
</pallas_src>

<mosaic_0001>
module attributes {stable_mosaic.version = 11 : i64} {
  func.func @kernel(%arg0: i32, %arg1: memref<1x8x1xi32, #tpu.memory_space<vmem>>, %arg2: memref<64x32xf32, #tpu.memory_space<vmem>>, %arg3: memref<2x8x32xf32, #tpu.memory_space<vmem>>, %arg4: memref<2x8x32xf32, #tpu.memory_space<vmem>>, %arg5: memref<32x128xf32, #tpu.memory_space<vmem>>, %arg6: memref<32x128xf32, #tpu.memory_space<vmem>>, %arg7: memref<1x128xf32, #tpu.memory_space<vmem>>, %arg8: memref<32x128xf32, #tpu.memory_space<vmem>>, %arg9: memref<32x128xf32, #tpu.memory_space<vmem>>, %arg10: memref<1x128xf32, #tpu.memory_space<vmem>>, %arg11: memref<32x64xf32, #tpu.memory_space<vmem>>, %arg12: memref<1x64xf32, #tpu.memory_space<vmem>>, %arg13: memref<1x8x64xf32, #tpu.memory_space<vmem>>, %arg14: memref<2x8x32xf32, #tpu.memory_space<vmem>>, %arg15: memref<2x8x32xf32, #tpu.memory_space<vmem>>, %arg16: memref<2x8x32xf32, #tpu.memory_space<vmem>>, %arg17: memref<2x8x32xf32, #tpu.memory_space<vmem>>) attributes {dimension_semantics = [#tpu.dimension_semantics<arbitrary>], iteration_bounds = array<i64: 1>, scalar_prefetch = 0 : i64, scratch_operands = 2 : i64, tpu.core_type = #tpu.core_type<tc>, window_params = [{transform_indices = @transform_0, window_bounds = array<i64: 1, 8, 1>}, {pipeline_mode = #tpu.pipeline_mode<synchronous>, transform_indices = @transform_1, window_bounds = array<i64: 64, 32>}, {pipeline_mode = #tpu.pipeline_mode<synchronous>, transform_indices = @transform_2, window_bounds = array<i64: 2, 8, 32>}, {pipeline_mode = #tpu.pipeline_mode<synchronous>, transform_indices = @transform_3, window_bounds = array<i64: 2, 8, 32>}, {pipeline_mode = #tpu.pipeline_mode<synchronous>, transform_indices = @transform_4, window_bounds = array<i64: 32, 128>}, {pipeline_mode = #tpu.pipeline_mode<synchronous>, transform_indices = @transform_5, window_bounds = array<i64: 32, 128>}, {pipeline_mode = #tpu.pipeline_mode<synchronous>, transform_indices = @transform_6, window_bounds = array<i64: 1, 128>}, {pipeline_mode = #tpu.pipeline_mode<synchronous>, transform_indices = @transform_7, window_bounds = array<i64: 32, 128>}, {pipeline_mode = #tpu.pipeline_mode<synchronous>, transform_indices = @transform_8, window_bounds = array<i64: 32, 128>}, {pipeline_mode = #tpu.pipeline_mode<synchronous>, transform_indices = @transform_9, window_bounds = array<i64: 1, 128>}, {pipeline_mode = #tpu.pipeline_mode<synchronous>, transform_indices = @transform_10, window_bounds = array<i64: 32, 64>}, {pipeline_mode = #tpu.pipeline_mode<synchronous>, transform_indices = @transform_11, window_bounds = array<i64: 1, 64>}, {transform_indices = @transform_12, window_bounds = array<i64: 1, 8, 64>}, {pipeline_mode = #tpu.pipeline_mode<synchronous>, transform_indices = @transform_13, window_bounds = array<i64: 2, 8, 32>}, {pipeline_mode = #tpu.pipeline_mode<synchronous>, transform_indices = @transform_14, window_bounds = array<i64: 2, 8, 32>}]} {
    %c0_i32 = arith.constant 0 : i32
    %0 = arith.cmpi eq, %arg0, %c0_i32 : i32
    %1 = arith.extui %0 : i1 to i32
    %c0_i32_0 = arith.constant 0 : i32
    %2 = arith.cmpi ne, %1, %c0_i32_0 : i32
    scf.if %2 {
      %c0_56 = arith.constant 0 : index
      %c0_57 = arith.constant 0 : index
      %c0_58 = arith.constant 0 : index
      %89 = vector.load %arg3[%c0_56, %c0_57, %c0_58] : memref<2x8x32xf32, #tpu.memory_space<vmem>>, vector<2x8x32xf32>
      %c0_59 = arith.constant 0 : index
      %c0_60 = arith.constant 0 : index
      %c0_61 = arith.constant 0 : index
      %90 = vector.load %arg16[%c0_59, %c0_60, %c0_61] : memref<2x8x32xf32, #tpu.memory_space<vmem>>, vector<2x8x32xf32>
      tpu.vector_store %arg16[%c0_59, %c0_60, %c0_61], %89 {strides = array<i32>} : memref<2x8x32xf32, #tpu.memory_space<vmem>>, vector<2x8x32xf32>,
      %c0_62 = arith.constant 0 : index
      %c0_63 = arith.constant 0 : index
      %c0_64 = arith.constant 0 : index
      %91 = vector.load %arg4[%c0_62, %c0_63, %c0_64] : memref<2x8x32xf32, #tpu.memory_space<vmem>>, vector<2x8x32xf32>
      %c0_65 = arith.constant 0 : index
      %c0_66 = arith.constant 0 : index
      %c0_67 = arith.constant 0 : index
      %92 = vector.load %arg17[%c0_65, %c0_66, %c0_67] : memref<2x8x32xf32, #tpu.memory_space<vmem>>, vector<2x8x32xf32>
      tpu.vector_store %arg17[%c0_65, %c0_66, %c0_67], %91 {strides = array<i32>} : memref<2x8x32xf32, #tpu.memory_space<vmem>>, vector<2x8x32xf32>,
    } else {
    }
    %c0 = arith.constant 0 : index
    %c0_1 = arith.constant 0 : index
    %c0_2 = arith.constant 0 : index
    %3 = vector.load %arg1[%c0, %c0_1, %c0_2] : memref<1x8x1xi32, #tpu.memory_space<vmem>>, vector<1x8x1xi32>
    %4 = vector.shape_cast %3 : vector<1x8x1xi32> to vector<8x1xi32>
    %5 = tpu.iota {dimensions = array<i32: 1>} : vector<8x64xi32>
    %6 = vector.broadcast %4 : vector<8x1xi32> to vector<8x64xi32>
    %7 = arith.cmpi eq, %5, %6 : vector<8x64xi32>
    %8 = arith.extui %7 : vector<8x64xi1> to vector<8x64xi32>
    %9 = arith.sitofp %8 : vector<8x64xi32> to vector<8x64xf32>
    %c0_3 = arith.constant 0 : index
    %c0_4 = arith.constant 0 : index
    %10 = vector.load %arg2[%c0_3, %c0_4] : memref<64x32xf32, #tpu.memory_space<vmem>>, vector<64x32xf32>
    %cst = arith.constant dense<0.000000e+00> : vector<8x32xf32>
    %11 = tpu.matmul %9, %10, %cst {dimension_numbers = #tpu.dot_dimension_numbers<[1], [0], [0], [1], [0, 0, 1, 1], [], []>} : vector<8x64xf32>, vector<64x32xf32>, vector<8x32xf32> -> vector<8x32xf32>
    %c0_5 = arith.constant 0 : index
    %c0_6 = arith.constant 0 : index
    %c0_7 = arith.constant 0 : index
    %12 = vector.load %arg16[%c0_5, %c0_6, %c0_7] : memref<2x8x32xf32, #tpu.memory_space<vmem>>, vector<1x8x32xf32>
    %13 = vector.shape_cast %12 : vector<1x8x32xf32> to vector<8x32xf32>
    %c0_8 = arith.constant 0 : index
    %c0_9 = arith.constant 0 : index
    %c0_10 = arith.constant 0 : index
    %14 = vector.load %arg17[%c0_8, %c0_9, %c0_10] : memref<2x8x32xf32, #tpu.memory_space<vmem>>, vector<1x8x32xf32>
    %15 = vector.shape_cast %14 : vector<1x8x32xf32> to vector<8x32xf32>
    %c0_11 = arith.constant 0 : index
    %c0_12 = arith.constant 0 : index
    %16 = vector.load %arg5[%c0_11, %c0_12] : memref<32x128xf32, #tpu.memory_space<vmem>>, vector<32x128xf32>
    %cst_13 = arith.constant dense<0.000000e+00> : vector<8x128xf32>
    %17 = tpu.matmul %11, %16, %cst_13 {dimension_numbers = #tpu.dot_dimension_numbers<[1], [0], [0], [1], [0, 0, 1, 1], [], []>} : vector<8x32xf32>, vector<32x128xf32>, vector<8x128xf32> -> vector<8x128xf32>
    %c0_14 = arith.constant 0 : index
    %c0_15 = arith.constant 0 : index
    %18 = vector.load %arg6[%c0_14, %c0_15] : memref<32x128xf32, #tpu.memory_space<vmem>>, vector<32x128xf32>
    %cst_16 = arith.constant dense<0.000000e+00> : vector<8x128xf32>
    %19 = tpu.matmul %13, %18, %cst_16 {dimension_numbers = #tpu.dot_dimension_numbers<[1], [0], [0], [1], [0, 0, 1, 1], [], []>} : vector<8x32xf32>, vector<32x128xf32>, vector<8x128xf32> -> vector<8x128xf32>
    %20 = arith.addf %17, %19 : vector<8x128xf32>
    %c0_17 = arith.constant 0 : index
    %c0_18 = arith.constant 0 : index
    %21 = vector.load %arg7[%c0_17, %c0_18] : memref<1x128xf32, #tpu.memory_space<vmem>>, vector<1x128xf32>
    %22 = vector.broadcast %21 : vector<1x128xf32> to vector<8x128xf32>
    %23 = arith.addf %20, %22 : vector<8x128xf32>
    %24 = arith.negf %23 : vector<8x128xf32>
    %25 = math.exp %24 : vector<8x128xf32>
    %cst_19 = arith.constant 1.000000e+00 : f32
    %26 = vector.broadcast %cst_19 : f32 to vector<8x128xf32>
    %27 = arith.addf %26, %25 : vector<8x128xf32>
    %28 = arith.divf %26, %27 : vector<8x128xf32>
    %29 = math.tanh %23 : vector<8x128xf32>
    %30 = vector.extract_strided_slice %28 {offsets = [0, 0], sizes = [8, 32], strides = [1, 1]} : vector<8x128xf32> to vector<8x32xf32>
    %31 = vector.extract_strided_slice %28 {offsets = [0, 32], sizes = [8, 32], strides = [1, 1]} : vector<8x128xf32> to vector<8x32xf32>
    %32 = vector.extract_strided_slice %29 {offsets = [0, 64], sizes = [8, 32], strides = [1, 1]} : vector<8x128xf32> to vector<8x32xf32>
    %33 = vector.extract_strided_slice %28 {offsets = [0, 96], sizes = [8, 32], strides = [1, 1]} : vector<8x128xf32> to vector<8x32xf32>
    %34 = arith.mulf %31, %15 : vector<8x32xf32>
    %35 = arith.mulf %30, %32 : vector<8x32xf32>
    %36 = arith.addf %34, %35 : vector<8x32xf32>
    %37 = math.tanh %36 : vector<8x32xf32>
    %38 = arith.mulf %33, %37 : vector<8x32xf32>
    %c0_20 = arith.constant 0 : index
    %c0_21 = arith.constant 0 : index
    %c0_22 = arith.constant 0 : index
    %39 = vector.load %arg16[%c0_20, %c0_21, %c0_22] : memref<2x8x32xf32, #tpu.memory_space<vmem>>, vector<1x8x32xf32>
    %40 = vector.shape_cast %39 : vector<1x8x32xf32> to vector<8x32xf32>
    %41 = vector.shape_cast %38 : vector<8x32xf32> to vector<1x8x32xf32>
    tpu.vector_store %arg16[%c0_20, %c0_21, %c0_22], %41 {strides = array<i32>} : memref<2x8x32xf32, #tpu.memory_space<vmem>>, vector<1x8x32xf32>,
    %c0_23 = arith.constant 0 : index
    %c0_24 = arith.constant 0 : index
    %c0_25 = arith.constant 0 : index
    %42 = vector.load %arg17[%c0_23, %c0_24, %c0_25] : memref<2x8x32xf32, #tpu.memory_space<vmem>>, vector<1x8x32xf32>
    %43 = vector.shape_cast %42 : vector<1x8x32xf32> to vector<8x32xf32>
    %44 = vector.shape_cast %36 : vector<8x32xf32> to vector<1x8x32xf32>
    tpu.vector_store %arg17[%c0_23, %c0_24, %c0_25], %44 {strides = array<i32>} : memref<2x8x32xf32, #tpu.memory_space<vmem>>, vector<1x8x32xf32>,
    %c1 = arith.constant 1 : index
    %c0_26 = arith.constant 0 : index
    %c0_27 = arith.constant 0 : index
    %45 = vector.load %arg16[%c1, %c0_26, %c0_27] : memref<2x8x32xf32, #tpu.memory_space<vmem>>, vector<1x8x32xf32>
    %46 = vector.shape_cast %45 : vector<1x8x32xf32> to vector<8x32xf32>
    %c1_28 = arith.constant 1 : index
    %c0_29 = arith.constant 0 : index
    %c0_30 = arith.constant 0 : index
    %47 = vector.load %arg17[%c1_28, %c0_29, %c0_30] : memref<2x8x32xf32, #tpu.memory_space<vmem>>, vector<1x8x32xf32>
    %48 = vector.shape_cast %47 : vector<1x8x32xf32> to vector<8x32xf32>
    %c0_31 = arith.constant 0 : index
    %c0_32 = arith.constant 0 : index
    %49 = vector.load %arg8[%c0_31, %c0_32] : memref<32x128xf32, #tpu.memory_space<vmem>>, vector<32x128xf32>
    %cst_33 = arith.constant dense<0.000000e+00> : vector<8x128xf32>
    %50 = tpu.matmul %38, %49, %cst_33 {dimension_numbers = #tpu.dot_dimension_numbers<[1], [0], [0], [1], [0, 0, 1, 1], [], []>} : vector<8x32xf32>, vector<32x128xf32>, vector<8x128xf32> -> vector<8x128xf32>
    %c0_34 = arith.constant 0 : index
    %c0_35 = arith.constant 0 : index
    %51 = vector.load %arg9[%c0_34, %c0_35] : memref<32x128xf32, #tpu.memory_space<vmem>>, vector<32x128xf32>
    %cst_36 = arith.constant dense<0.000000e+00> : vector<8x128xf32>
    %52 = tpu.matmul %46, %51, %cst_36 {dimension_numbers = #tpu.dot_dimension_numbers<[1], [0], [0], [1], [0, 0, 1, 1], [], []>} : vector<8x32xf32>, vector<32x128xf32>, vector<8x128xf32> -> vector<8x128xf32>
    %53 = arith.addf %50, %52 : vector<8x128xf32>
    %c0_37 = arith.constant 0 : index
    %c0_38 = arith.constant 0 : index
    %54 = vector.load %arg10[%c0_37, %c0_38] : memref<1x128xf32, #tpu.memory_space<vmem>>, vector<1x128xf32>
    %55 = vector.broadcast %54 : vector<1x128xf32> to vector<8x128xf32>
    %56 = arith.addf %53, %55 : vector<8x128xf32>
    %57 = arith.negf %56 : vector<8x128xf32>
    %58 = math.exp %57 : vector<8x128xf32>
    %cst_39 = arith.constant 1.000000e+00 : f32
    %59 = vector.broadcast %cst_39 : f32 to vector<8x128xf32>
    %60 = arith.addf %59, %58 : vector<8x128xf32>
    %61 = arith.divf %59, %60 : vector<8x128xf32>
    %62 = math.tanh %56 : vector<8x128xf32>
    %63 = vector.extract_strided_slice %61 {offsets = [0, 0], sizes = [8, 32], strides = [1, 1]} : vector<8x128xf32> to vector<8x32xf32>
    %64 = vector.extract_strided_slice %61 {offsets = [0, 32], sizes = [8, 32], strides = [1, 1]} : vector<8x128xf32> to vector<8x32xf32>
    %65 = vector.extract_strided_slice %62 {offsets = [0, 64], sizes = [8, 32], strides = [1, 1]} : vector<8x128xf32> to vector<8x32xf32>
    %66 = vector.extract_strided_slice %61 {offsets = [0, 96], sizes = [8, 32], strides = [1, 1]} : vector<8x128xf32> to vector<8x32xf32>
    %67 = arith.mulf %64, %48 : vector<8x32xf32>
    %68 = arith.mulf %63, %65 : vector<8x32xf32>
    %69 = arith.addf %67, %68 : vector<8x32xf32>
    %70 = math.tanh %69 : vector<8x32xf32>
    %71 = arith.mulf %66, %70 : vector<8x32xf32>
    %c1_40 = arith.constant 1 : index
    %c0_41 = arith.constant 0 : index
    %c0_42 = arith.constant 0 : index
    %72 = vector.load %arg16[%c1_40, %c0_41, %c0_42] : memref<2x8x32xf32, #tpu.memory_space<vmem>>, vector<1x8x32xf32>
    %73 = vector.shape_cast %72 : vector<1x8x32xf32> to vector<8x32xf32>
    %74 = vector.shape_cast %71 : vector<8x32xf32> to vector<1x8x32xf32>
    tpu.vector_store %arg16[%c1_40, %c0_41, %c0_42], %74 {strides = array<i32>} : memref<2x8x32xf32, #tpu.memory_space<vmem>>, vector<1x8x32xf32>,
    %c1_43 = arith.constant 1 : index
    %c0_44 = arith.constant 0 : index
    %c0_45 = arith.constant 0 : index
    %75 = vector.load %arg17[%c1_43, %c0_44, %c0_45] : memref<2x8x32xf32, #tpu.memory_space<vmem>>, vector<1x8x32xf32>
    %76 = vector.shape_cast %75 : vector<1x8x32xf32> to vector<8x32xf32>
    %77 = vector.shape_cast %69 : vector<8x32xf32> to vector<1x8x32xf32>
    tpu.vector_store %arg17[%c1_43, %c0_44, %c0_45], %77 {strides = array<i32>} : memref<2x8x32xf32, #tpu.memory_space<vmem>>, vector<1x8x32xf32>,
    %c0_46 = arith.constant 0 : index
    %c0_47 = arith.constant 0 : index
    %78 = vector.load %arg11[%c0_46, %c0_47] : memref<32x64xf32, #tpu.memory_space<vmem>>, vector<32x64xf32>
    %cst_48 = arith.constant dense<0.000000e+00> : vector<8x64xf32>
    %79 = tpu.matmul %71, %78, %cst_48 {dimension_numbers = #tpu.dot_dimension_numbers<[1], [0], [0], [1], [0, 0, 1, 1], [], []>} : vector<8x32xf32>, vector<32x64xf32>, vector<8x64xf32> -> vector<8x64xf32>
    %c0_49 = arith.constant 0 : index
    %c0_50 = arith.constant 0 : index
    %80 = vector.load %arg12[%c0_49, %c0_50] : memref<1x64xf32, #tpu.memory_space<vmem>>, vector<1x64xf32>
    %81 = vector.broadcast %80 : vector<1x64xf32> to vector<8x64xf32>
    %82 = arith.addf %79, %81 : vector<8x64xf32>
    %c0_51 = arith.constant 0 : index
    %c0_52 = arith.constant 0 : index
    %c0_53 = arith.constant 0 : index
    %83 = vector.load %arg13[%c0_51, %c0_52, %c0_53] : memref<1x8x64xf32, #tpu.memory_space<vmem>>, vector<1x8x64xf32>
    %84 = vector.shape_cast %83 : vector<1x8x64xf32> to vector<8x64xf32>
    %85 = vector.shape_cast %82 : vector<8x64xf32> to vector<1x8x64xf32>
    tpu.vector_store %arg13[%c0_51, %c0_52, %c0_53], %85 {strides = array<i32>} : memref<1x8x64xf32, #tpu.memory_space<vmem>>, vector<1x8x64xf32>,
    %c0_i32_54 = arith.constant 0 : i32
    %86 = arith.cmpi eq, %arg0, %c0_i32_54 : i32
    %87 = arith.extui %86 : i1 to i32
    %c0_i32_55 = arith.constant 0 : i32
    %88 = arith.cmpi ne, %87, %c0_i32_55 : i32
    scf.if %88 {
      %c0_56 = arith.constant 0 : index
      %c0_57 = arith.constant 0 : index
      %c0_58 = arith.constant 0 : index
      %89 = vector.load %arg16[%c0_56, %c0_57, %c0_58] : memref<2x8x32xf32, #tpu.memory_space<vmem>>, vector<2x8x32xf32>
      %c0_59 = arith.constant 0 : index
      %c0_60 = arith.constant 0 : index
      %c0_61 = arith.constant 0 : index
      %90 = vector.load %arg14[%c0_59, %c0_60, %c0_61] : memref<2x8x32xf32, #tpu.memory_space<vmem>>, vector<2x8x32xf32>
      tpu.vector_store %arg14[%c0_59, %c0_60, %c0_61], %89 {strides = array<i32>} : memref<2x8x32xf32, #tpu.memory_space<vmem>>, vector<2x8x32xf32>,
      %c0_62 = arith.constant 0 : index
      %c0_63 = arith.constant 0 : index
      %c0_64 = arith.constant 0 : index
      %91 = vector.load %arg17[%c0_62, %c0_63, %c0_64] : memref<2x8x32xf32, #tpu.memory_space<vmem>>, vector<2x8x32xf32>
      %c0_65 = arith.constant 0 : index
      %c0_66 = arith.constant 0 : index
      %c0_67 = arith.constant 0 : index
      %92 = vector.load %arg15[%c0_65, %c0_66, %c0_67] : memref<2x8x32xf32, #tpu.memory_space<vmem>>, vector<2x8x32xf32>
      tpu.vector_store %arg15[%c0_65, %c0_66, %c0_67], %91 {strides = array<i32>} : memref<2x8x32xf32, #tpu.memory_space<vmem>>, vector<2x8x32xf32>,
    } else {
    }
    return
  }
  func.func @transform_0(%arg0: i32) -> (i32, i32, i32) {
    %c0_i32 = arith.constant 0 : i32
    %c0_i32_0 = arith.constant 0 : i32
    %c0_i32_1 = arith.constant 0 : i32
    return %arg0, %c0_i32, %c0_i32_0 : i32, i32, i32
  }
  func.func @transform_1(%arg0: i32) -> (i32, i32) {
    %c0_i32 = arith.constant 0 : i32
    %c0_i32_0 = arith.constant 0 : i32
    %c0_i32_1 = arith.constant 0 : i32
    return %c0_i32, %c0_i32_0 : i32, i32
  }
  func.func @transform_2(%arg0: i32) -> (i32, i32, i32) {
    %c0_i32 = arith.constant 0 : i32
    %c0_i32_0 = arith.constant 0 : i32
    %c0_i32_1 = arith.constant 0 : i32
    %c0_i32_2 = arith.constant 0 : i32
    return %c0_i32, %c0_i32_0, %c0_i32_1 : i32, i32, i32
  }
  func.func @transform_3(%arg0: i32) -> (i32, i32, i32) {
    %c0_i32 = arith.constant 0 : i32
    %c0_i32_0 = arith.constant 0 : i32
    %c0_i32_1 = arith.constant 0 : i32
    %c0_i32_2 = arith.constant 0 : i32
    return %c0_i32, %c0_i32_0, %c0_i32_1 : i32, i32, i32
  }
  func.func @transform_4(%arg0: i32) -> (i32, i32) {
    %c0_i32 = arith.constant 0 : i32
    %c0_i32_0 = arith.constant 0 : i32
    %c0_i32_1 = arith.constant 0 : i32
    return %c0_i32, %c0_i32_0 : i32, i32
  }
  func.func @transform_5(%arg0: i32) -> (i32, i32) {
    %c0_i32 = arith.constant 0 : i32
    %c0_i32_0 = arith.constant 0 : i32
    %c0_i32_1 = arith.constant 0 : i32
    return %c0_i32, %c0_i32_0 : i32, i32
  }
  func.func @transform_6(%arg0: i32) -> (i32, i32) {
    %c0_i32 = arith.constant 0 : i32
    %c0_i32_0 = arith.constant 0 : i32
    %c0_i32_1 = arith.constant 0 : i32
    return %c0_i32, %c0_i32_0 : i32, i32
  }
  func.func @transform_7(%arg0: i32) -> (i32, i32) {
    %c0_i32 = arith.constant 0 : i32
    %c0_i32_0 = arith.constant 0 : i32
    %c0_i32_1 = arith.constant 0 : i32
    return %c0_i32, %c0_i32_0 : i32, i32
  }
  func.func @transform_8(%arg0: i32) -> (i32, i32) {
    %c0_i32 = arith.constant 0 : i32
    %c0_i32_0 = arith.constant 0 : i32
    %c0_i32_1 = arith.constant 0 : i32
    return %c0_i32, %c0_i32_0 : i32, i32
  }
  func.func @transform_9(%arg0: i32) -> (i32, i32) {
    %c0_i32 = arith.constant 0 : i32
    %c0_i32_0 = arith.constant 0 : i32
    %c0_i32_1 = arith.constant 0 : i32
    return %c0_i32, %c0_i32_0 : i32, i32
  }
  func.func @transform_10(%arg0: i32) -> (i32, i32) {
    %c0_i32 = arith.constant 0 : i32
    %c0_i32_0 = arith.constant 0 : i32
    %c0_i32_1 = arith.constant 0 : i32
    return %c0_i32, %c0_i32_0 : i32, i32
  }
  func.func @transform_11(%arg0: i32) -> (i32, i32) {
    %c0_i32 = arith.constant 0 : i32
    %c0_i32_0 = arith.constant 0 : i32
    %c0_i32_1 = arith.constant 0 : i32
    return %c0_i32, %c0_i32_0 : i32, i32
  }
  func.func @transform_12(%arg0: i32) -> (i32, i32, i32) {
    %c0_i32 = arith.constant 0 : i32
    %c0_i32_0 = arith.constant 0 : i32
    %c0_i32_1 = arith.constant 0 : i32
    return %arg0, %c0_i32, %c0_i32_0 : i32, i32, i32
  }
  func.func @transform_13(%arg0: i32) -> (i32, i32, i32) {
    %c0_i32 = arith.constant 0 : i32
    %c0_i32_0 = arith.constant 0 : i32
    %c0_i32_1 = arith.constant 0 : i32
    %c0_i32_2 = arith.constant 0 : i32
    return %c0_i32, %c0_i32_0, %c0_i32_1 : i32, i32, i32
  }
  func.func @transform_14(%arg0: i32) -> (i32, i32, i32) {
    %c0_i32 = arith.constant 0 : i32
    %c0_i32_0 = arith.constant 0 : i32
    %c0_i32_1 = arith.constant 0 : i32
    %c0_i32_2 = arith.constant 0 : i32
    return %c0_i32, %c0_i32_0, %c0_i32_1 : i32, i32, i32
  }
}

</mosaic_0001>

<llo_original>
// kernel: decoder_forward.1
$region0: #{decoder_forward.1}
  #allocation0 [shape = 'u32[]', space=smem, size = 0x4, offset = 0x4, fixed_abs, tag = 'smem constant byte address 0x4 - core index']
  #allocation1 [shape = 'u32[144,128]{1,0:T(1,128)}', space=vmem, size = 0x12000, scoped, tag = 'internal scratch']
  #allocation2 [shape = 'f32[2,8,32]{2,1,0:T(8,128)}', space=vmem, size = 0x2000, scoped, tag = 'scratch operand']
  #allocation3 [shape = 'f32[2,8,32]{2,1,0:T(8,128)}', space=vmem, size = 0x2000, scoped, tag = 'scratch operand']
  %s0 = inlined_call_operand.vmem [shape: s32[1,8,1], index: 0, kind: input, shape index: {}]
  %s1 = inlined_call_operand.hbm [shape: f32[64,32], index: 1, kind: input, shape index: {}]
  %s2 = inlined_call_operand.vmem [shape: f32[2,8,32], index: 2, kind: input, shape index: {}]
  %s3 = inlined_call_operand.hbm [shape: f32[2,8,32], index: 3, kind: input, shape index: {}]
  %s4 = inlined_call_operand.hbm [shape: f32[32,128], index: 4, kind: input, shape index: {}]
  %s5 = inlined_call_operand.hbm [shape: f32[32,128], index: 5, kind: input, shape index: {}]
  %s6 = inlined_call_operand.hbm [shape: f32[1,128], index: 6, kind: input, shape index: {}]
  %s7 = inlined_call_operand.hbm [shape: f32[32,128], index: 7, kind: input, shape index: {}]
  %s8 = inlined_call_operand.hbm [shape: f32[32,128], index: 8, kind: input, shape index: {}]
  %s9 = inlined_call_operand.vmem [shape: f32[1,128], index: 9, kind: input, shape index: {}]
  %s10 = inlined_call_operand.vmem [shape: f32[32,64], index: 10, kind: input, shape index: {}]
  %s11 = inlined_call_operand.vmem [shape: f32[1,64], index: 11, kind: input, shape index: {}]
  %s12 = inlined_call_operand.hbm [shape: f32[1,8,64], index: 12, kind: output, shape index: {0}]
  %s13 = inlined_call_operand.hbm [shape: f32[2,8,32], index: 13, kind: output, shape index: {1}]
  %s14 = inlined_call_operand.hbm [shape: f32[2,8,32], index: 14, kind: output, shape index: {2}]
  %15 = xla_tuple %s12, %s13, %s14
  %s16 = sld [smem:[#allocation0]]
  $region110: #{decoder_forward.1} parent=0
    _
  %s18 = ssub.s32 1, %s16
  %s19 = scalar_select 0, %s18, %s16
  $region1: #{decoder_forward.1} parent=0
    #allocation4 [shape = 'u8[32768]{0}', space=vmem, size = 0x8000, scoped, tag = 'input window, operand 1, single buffered']
    #allocation5 [shape = 's32[1]{0}', space=sflag, size = 0x4, scoped, tag = 'scoped memory for decoder_forward.1']
    #allocation6 [shape = 's32[1]{0}', space=sflag, size = 0x4, scoped, tag = 'scoped memory for decoder_forward.1']
    #allocation7 [shape = 'u8[8192]{0}', space=vmem, size = 0x2000, scoped, tag = 'input window, operand 3, single buffered']
    #allocation8 [shape = 's32[1]{0}', space=sflag, size = 0x4, scoped, tag = 'scoped memory for decoder_forward.1']
    #allocation9 [shape = 'u8[16384]{0}', space=vmem, size = 0x4000, scoped, tag = 'input window, operand 4, single buffered']
    #allocation10 [shape = 'u8[16384]{0}', space=vmem, size = 0x4000, scoped, tag = 'input window, operand 5, single buffered']
    #allocation11 [shape = 's32[1]{0}', space=sflag, size = 0x4, scoped, tag = 'scoped memory for decoder_forward.1']
    #allocation12 [shape = 'u8[512]{0}', space=vmem, size = 0x400, scoped, tag = 'input window, operand 6, single buffered']
    #allocation13 [shape = 'u8[16384]{0}', space=vmem, size = 0x4000, scoped, tag = 'input window, operand 7, single buffered']
    #allocation14 [shape = 's32[1]{0}', space=sflag, size = 0x4, scoped, tag = 'scoped memory for decoder_forward.1']
    #allocation15 [shape = 'u8[16384]{0}', space=vmem, size = 0x4000, scoped, tag = 'input window, operand 8, single buffered']
    #allocation16 [shape = 'u8[4096]{0}', space=vmem, size = 0x1000, scoped, tag = 'output window, operand 0, single buffered']
    #allocation17 [shape = 'u8[8192]{0}', space=vmem, size = 0x2000, scoped, tag = 'output window, operand 1, single buffered']
    #allocation18 [shape = 's32[1]{0}', space=sflag, size = 0x4, scoped, tag = 'scoped memory for decoder_forward.1']
    #allocation19 [shape = 'u8[8192]{0}', space=vmem, size = 0x2000, scoped, tag = 'output window, operand 2, single buffered']
    %20 = vsyncpa [#allocation5], 0
    %21 = vsyncpa [#allocation8], 0
    %22 = vsyncpa [#allocation11], 0
    %23 = vsyncpa [#allocation14], 0
    %24 = vsyncpa [#allocation6], 0
    %25 = vsyncpa [#allocation18], 0
    // Predicated region
    $region2: #{decoder_forward.1} parent=1 // pred_check
      _
    $region3: #{decoder_forward.1} parent=1 // pred_check_branch
      %27 = sbr.rel (0) target = $region5
    $region4: #{decoder_forward.1} parent=1 // pred_region
      _
    $region5: #{decoder_forward.1} parent=1 // pred_fallthru
      _
    // Predicated region
    $region6: #{decoder_forward.1} parent=1 // pred_check
      _
    $region7: #{decoder_forward.1} parent=1 // pred_check_branch
      %29 = sbr.rel (0) target = $region9
    $region8: #{decoder_forward.1} parent=1 // pred_region
      %s31 = ssub.s32 1024, 1024
      %32 = vsyncadd [#allocation5], %s31
      %s33 = sshll.u32 [#allocation4], 4
      %s34 = int_to_ptr.vmem [resolvable:$true] %s33
      %39 = dma.hbm_to_vmem [thread:$0]  %s1, 1024, %s34, [#allocation5], 128, 128, 8
    $region9: #{decoder_forward.1} parent=1 // pred_fallthru
      _
    // Predicated region
    $region10: #{decoder_forward.1} parent=1 // pred_check
      _
    $region11: #{decoder_forward.1} parent=1 // pred_check_branch
      %41 = sbr.rel (0) target = $region13
    $region12: #{decoder_forward.1} parent=1 // pred_region
      _
    $region13: #{decoder_forward.1} parent=1 // pred_fallthru
      _
    // Predicated region
    $region14: #{decoder_forward.1} parent=1 // pred_check
      _
    $region15: #{decoder_forward.1} parent=1 // pred_check_branch
      %43 = sbr.rel (0) target = $region17
    $region16: #{decoder_forward.1} parent=1 // pred_region
      %s45 = ssub.s32 256, 256
      %46 = vsyncadd [#allocation8], %s45
      %s47 = sshll.u32 [#allocation7], 4
      %s48 = int_to_ptr.vmem [resolvable:$true] %s47
      %53 = dma.hbm_to_vmem [thread:$0]  %s3, 256, %s48, [#allocation8], 128, 128, 8
    $region17: #{decoder_forward.1} parent=1 // pred_fallthru
      _
    // Predicated region
    $region18: #{decoder_forward.1} parent=1 // pred_check
      _
    $region19: #{decoder_forward.1} parent=1 // pred_check_branch
      %55 = sbr.rel (0) target = $region21
    $region20: #{decoder_forward.1} parent=1 // pred_region
      %s57 = ssub.s32 512, 512
      %58 = vsyncadd [#allocation8], %s57
      %s59 = sshll.u32 [#allocation9], 4
      %s60 = int_to_ptr.vmem [resolvable:$true] %s59
      %65 = dma.hbm_to_vmem [thread:$0]  %s4, 512, %s60, [#allocation8], 128, 128, 8
    $region21: #{decoder_forward.1} parent=1 // pred_fallthru
      _
    // Predicated region
    $region22: #{decoder_forward.1} parent=1 // pred_check
      _
    $region23: #{decoder_forward.1} parent=1 // pred_check_branch
      %67 = sbr.rel (0) target = $region25
    $region24: #{decoder_forward.1} parent=1 // pred_region
      %s69 = ssub.s32 512, 512
      %70 = vsyncadd [#allocation11], %s69
      %s71 = sshll.u32 [#allocation10], 4
      %s72 = int_to_ptr.vmem [resolvable:$true] %s71
      %77 = dma.hbm_to_vmem [thread:$0]  %s5, 512, %s72, [#allocation11], 128, 128, 8
    $region25: #{decoder_forward.1} parent=1 // pred_fallthru
      _
    // Predicated region
    $region26: #{decoder_forward.1} parent=1 // pred_check
      _
    $region27: #{decoder_forward.1} parent=1 // pred_check_branch
      %79 = sbr.rel (0) target = $region29
    $region28: #{decoder_forward.1} parent=1 // pred_region
      %s81 = ssub.s32 16, 16
      %82 = vsyncadd [#allocation11], %s81
      %s84 = sshll.u32 [#allocation12], 4
      %s85 = int_to_ptr.vmem [resolvable:$true] %s84
      %87 = dma.hbm_to_vmem [thread:$0]  %s6, 16, %s85, [#allocation11]
    $region29: #{decoder_forward.1} parent=1 // pred_fallthru
      _
    // Predicated region
    $region30: #{decoder_forward.1} parent=1 // pred_check
      _
    $region31: #{decoder_forward.1} parent=1 // pred_check_branch
      %89 = sbr.rel (0) target = $region33
    $region32: #{decoder_forward.1} parent=1 // pred_region
      %s91 = ssub.s32 512, 512
      %92 = vsyncadd [#allocation14], %s91
      %s93 = sshll.u32 [#allocation13], 4
      %s94 = int_to_ptr.vmem [resolvable:$true] %s93
      %99 = dma.hbm_to_vmem [thread:$0]  %s7, 512, %s94, [#allocation14], 128, 128, 8
    $region33: #{decoder_forward.1} parent=1 // pred_fallthru
      _
    // Predicated region
    $region34: #{decoder_forward.1} parent=1 // pred_check
      _
    $region35: #{decoder_forward.1} parent=1 // pred_check_branch
      %101 = sbr.rel (0) target = $region37
    $region36: #{decoder_forward.1} parent=1 // pred_region
      %s103 = ssub.s32 512, 512
      %104 = vsyncadd [#allocation14], %s103
      %s105 = sshll.u32 [#allocation15], 4
      %s106 = int_to_ptr.vmem [resolvable:$true] %s105
      %111 = dma.hbm_to_vmem [thread:$0]  %s8, 512, %s106, [#allocation14], 128, 128, 8
    $region37: #{decoder_forward.1} parent=1 // pred_fallthru
      _
    // Predicated region
    $region38: #{decoder_forward.1} parent=1 // pred_check
      _
    $region39: #{decoder_forward.1} parent=1 // pred_check_branch
      %113 = sbr.rel (0) target = $region41
    $region40: #{decoder_forward.1} parent=1 // pred_region
      _
    $region41: #{decoder_forward.1} parent=1 // pred_fallthru
      _
    // Predicated region
    $region42: #{decoder_forward.1} parent=1 // pred_check
      _
    $region43: #{decoder_forward.1} parent=1 // pred_check_branch
      %115 = sbr.rel (0) target = $region45
    $region44: #{decoder_forward.1} parent=1 // pred_region
      _
    $region45: #{decoder_forward.1} parent=1 // pred_fallthru
      _
    // Predicated region
    $region46: #{decoder_forward.1} parent=1 // pred_check
      _
    $region47: #{decoder_forward.1} parent=1 // pred_check_branch
      %117 = sbr.rel (0) target = $region49
    $region48: #{decoder_forward.1} parent=1 // pred_region
      _
    $region49: #{decoder_forward.1} parent=1 // pred_fallthru
      _
    // Predicated region
    $region50: #{decoder_forward.1} parent=1 // pred_check
      _
    $region51: #{decoder_forward.1} parent=1 // pred_check_branch
      %119 = sbr.rel (0) target = $region53
    $region52: #{decoder_forward.1} parent=1 // pred_region
      %120 = dma.done [#allocation5], 1024
    $region53: #{decoder_forward.1} parent=1 // pred_fallthru
      _
    // Predicated region
    $region54: #{decoder_forward.1} parent=1 // pred_check
      _
    $region55: #{decoder_forward.1} parent=1 // pred_check_branch
      %122 = sbr.rel (0) target = $region57
    $region56: #{decoder_forward.1} parent=1 // pred_region
      %123 = dma.done [#allocation8], 256
    $region57: #{decoder_forward.1} parent=1 // pred_fallthru
      _
    // Predicated region
    $region58: #{decoder_forward.1} parent=1 // pred_check
      _
    $region59: #{decoder_forward.1} parent=1 // pred_check_branch
      %125 = sbr.rel (0) target = $region61
    $region60: #{decoder_forward.1} parent=1 // pred_region
      %126 = dma.done [#allocation8], 512
    $region61: #{decoder_forward.1} parent=1 // pred_fallthru
      _
    // Predicated region
    $region62: #{decoder_forward.1} parent=1 // pred_check
      _
    $region63: #{decoder_forward.1} parent=1 // pred_check_branch
      %128 = sbr.rel (0) target = $region65
    $region64: #{decoder_forward.1} parent=1 // pred_region
      %129 = dma.done [#allocation11], 512
    $region65: #{decoder_forward.1} parent=1 // pred_fallthru
      _
    // Predicated region
    $region66: #{decoder_forward.1} parent=1 // pred_check
      _
    $region67: #{decoder_forward.1} parent=1 // pred_check_branch
      %131 = sbr.rel (0) target = $region69
    $region68: #{decoder_forward.1} parent=1 // pred_region
      %132 = dma.done [#allocation11], 16
    $region69: #{decoder_forward.1} parent=1 // pred_fallthru
      _
    // Predicated region
    $region70: #{decoder_forward.1} parent=1 // pred_check
      _
    $region71: #{decoder_forward.1} parent=1 // pred_check_branch
      %134 = sbr.rel (0) target = $region73
    $region72: #{decoder_forward.1} parent=1 // pred_region
      %135 = dma.done [#allocation14], 512
    $region73: #{decoder_forward.1} parent=1 // pred_fallthru
      _
    // Predicated region
    $region74: #{decoder_forward.1} parent=1 // pred_check
      _
    $region75: #{decoder_forward.1} parent=1 // pred_check_branch
      %137 = sbr.rel (0) target = $region77
    $region76: #{decoder_forward.1} parent=1 // pred_region
      %138 = dma.done [#allocation14], 512
    $region77: #{decoder_forward.1} parent=1 // pred_fallthru
      _
    %p139 = scmp.eq.s32.totalorder 0, 0
    // Predicated region
    $region78: #{decoder_forward.1} parent=1 // pred_check
      %p140 = pneg %p139
    $region79: #{decoder_forward.1} parent=1 // pred_check_branch
      %142 = sbr.rel (%p140) target = $region81
    $region80: #{decoder_forward.1} parent=1 // pred_region
      %v143 = vld [vmem:[%s2] sm:$0xff]
      %v144 = vld [vmem:[%s2 + $0x8] sm:$0xff]
      %vm145 = vcmask 261120
      %146 = vst.msk [vmem:[#allocation2] sm:$0xff] %vm145, %v143
      %147 = vst.msk [vmem:[#allocation2 + $0x8] sm:$0xff] %vm145, %v144
      %v148 = vld [vmem:[#allocation7] sm:$0xff]
      %v149 = vld [vmem:[#allocation7 + $0x8] sm:$0xff]
      %150 = vst.msk [vmem:[#allocation3] sm:$0xff] %vm145, %v148
      %151 = vst.msk [vmem:[#allocation3 + $0x8] sm:$0xff] %vm145, %v149
    $region81: #{decoder_forward.1} parent=1 // pred_fallthru
      _
    %v152 = vld [vmem:[%s0] sm:$0xff]
    %v153 = vlaneseq
    %v154 = vand.u32 %v153, 127
    %155 = vset.pattern.permute.xlu0 0
    %156 = vperm.xlu0 %155, %v152
    %v157 = vpop.permute.xlu0 %156
    %vm158 = vcmp.eq.s32.totalorder %v154, %v157
    %v159 = vsel %vm158, 1, 0
    %v160 = vcvt.s32.f32 %v159
    %v161 = vld [vmem:[#allocation4] sm:$0xff]
    %v162 = vld [vmem:[#allocation4 + $0x8] sm:$0xff]
    %v163 = vld [vmem:[#allocation4 + $0x10] sm:$0xff]
    %v164 = vld [vmem:[#allocation4 + $0x18] sm:$0xff]
    %v165 = vld [vmem:[#allocation4 + $0x20] sm:$0xff]
    %v166 = vld [vmem:[#allocation4 + $0x28] sm:$0xff]
    %v167 = vld [vmem:[#allocation4 + $0x30] sm:$0xff]
    %v168 = vld [vmem:[#allocation4 + $0x38] sm:$0xff]
    %vm169 = vcmask 523264
    %v171 = vsel %vm169, %v160, 0
    %173 = vmatprep.subr.mxu0 0.0
    %174 = vmatpush1.msra.mxu0 %v161
    %175 = vmatprep.subr.mxu0 0.0
    %176 = vmatpush1.msra.mxu0 %v162
    %177 = vmatprep.subr.mxu0 0.0
    %178 = vmatpush1.msra.mxu0 %v163
    %179 = vmatprep.subr.mxu0 0.0
    %180 = vmatpush1.msra.mxu0 %v164
    %181 = vmatprep.subr.mxu0 0.0
    %182 = vmatpush1.msra.mxu0 %v165
    %183 = vmatprep.subr.mxu0 0.0
    %184 = vmatpush1.msra.mxu0 %v166
    %185 = vmatprep.subr.mxu0 0.0
    %186 = vmatpush1.msra.mxu0 %v167
    %187 = vmatprep.subr.mxu0 0.0
    %188 = vmatpush1.msra.mxu0 %v168
    %189 = vmatprep.subr.mxu0 0.0
    %190 = vmatpush1.msra.mxu0 0.0
    %191 = vmatprep.subr.mxu0 0.0
    %192 = vmatpush1.msra.mxu0 0.0
    %193 = vmatprep.subr.mxu0 0.0
    %194 = vmatpush1.msra.mxu0 0.0
    %195 = vmatprep.subr.mxu0 0.0
    %196 = vmatpush1.msra.mxu0 0.0
    %197 = vmatprep.subr.mxu0 0.0
    %198 = vmatpush1.msra.mxu0 0.0
    %199 = vmatprep.subr.mxu0 0.0
    %200 = vmatpush1.msra.mxu0 0.0
    %201 = vmatprep.subr.mxu0 0.0
    %202 = vmatpush1.msra.mxu0 0.0
    %203 = vmatprep.subr.mxu0 0.0
    %204 = vmatpush1.msra.mxu0 0.0
    %205 = vmatprep.subr.mxu0 0.0
    %206 = vmatpush1.msra.mxu0 0.0
    %207 = vmatprep.subr.mxu0 0.0
    %208 = vmatpush1.msra.mxu0 0.0
    %209 = vmatprep.subr.mxu0 0.0
    %210 = vmatpush1.msra.mxu0 0.0
    %211 = vmatprep.subr.mxu0 0.0
    %212 = vmatpush1.msra.mxu0 0.0
    %213 = vmatprep.subr.mxu0 0.0
    %214 = vmatpush1.msra.mxu0 0.0
    %215 = vmatprep.subr.mxu0 0.0
    %216 = vmatpush1.msra.mxu0 0.0
    %217 = vmatprep.subr.mxu0 0.0
    %218 = vmatpush1.msra.mxu0 0.0
    %219 = vmatprep.subr.mxu0 0.0
    %220 = vmatpush1.msra.mxu0 0.0
    %221 = vmatprep.subr.mxu0 0.0
    %222 = vmatpush1.msra.mxu0 0.0
    %223 = vmatprep.subr.mxu0 0.0
    %224 = vmatpush1.msra.mxu0 0.0
    %225 = vmatprep.subr.mxu0 0.0
    %226 = vmatpush1.msra.mxu0 0.0
    %227 = vmatprep.subr.mxu0 0.0
    %228 = vmatpush1.msra.mxu0 0.0
    %229 = vmatprep.subr.mxu0 0.0
    %230 = vmatpush1.msra.mxu0 0.0
    %231 = vmatprep.subr.mxu0 0.0
    %232 = vmatpush1.msra.mxu0 0.0
    %233 = vmatprep.subr.mxu0 0.0
    %234 = vmatpush1.msra.mxu0 0.0
    %235 = vmatprep.subr.mxu0 0.0
    %236 = vmatpush1.msra.mxu0 0.0
    %237 = vmatprep.mubr.f32.mxu0 0.0
    %238 = vmatmul.mubr.f32.gmra.mrb[0].mxu0 %v171
    %v239 = vpop.f32.mrb[0].mxu0
    %v240 = vadd.f32 0.0, %v239
    %v241 = vpop.f32.mrb[0].mxu0
    %242 = vdwg.mxu0
    %v243 = vld [vmem:[#allocation2] sm:$0xff]
    %v244 = vld [vmem:[#allocation3] sm:$0xff]
    %v245 = vld [vmem:[#allocation9] sm:$0xff]
    %v246 = vld [vmem:[#allocation9 + $0x8] sm:$0xff]
    %v247 = vld [vmem:[#allocation9 + $0x10] sm:$0xff]
    %v248 = vld [vmem:[#allocation9 + $0x18] sm:$0xff]
    %v249 = vld [vmem:[#allocation10] sm:$0xff]
    %v250 = vld [vmem:[#allocation10 + $0x8] sm:$0xff]
    %v251 = vld [vmem:[#allocation10 + $0x10] sm:$0xff]
    %v252 = vld [vmem:[#allocation10 + $0x18] sm:$0xff]
    %vm253 = vcmask 261120
    %v255 = vsel %vm253, %v243, 0
    %257 = vmatprep.subr.mxu0 0.0
    %258 = vmatpush1.msra.mxu0 %v249
    %259 = vmatprep.subr.mxu0 0.0
    %260 = vmatpush1.msra.mxu0 %v250
    %261 = vmatprep.subr.mxu0 0.0
    %262 = vmatpush1.msra.mxu0 %v251
    %263 = vmatprep.subr.mxu0 0.0
    %264 = vmatpush1.msra.mxu0 %v252
    %265 = vmatprep.subr.mxu0 0.0
    %266 = vmatpush1.msra.mxu0 0.0
    %267 = vmatprep.subr.mxu0 0.0
    %268 = vmatpush1.msra.mxu0 0.0
    %269 = vmatprep.subr.mxu0 0.0
    %270 = vmatpush1.msra.mxu0 0.0
    %271 = vmatprep.subr.mxu0 0.0
    %272 = vmatpush1.msra.mxu0 0.0
    %273 = vmatprep.subr.mxu0 0.0
    %274 = vmatpush1.msra.mxu0 0.0
    %275 = vmatprep.subr.mxu0 0.0
    %276 = vmatpush1.msra.mxu0 0.0
    %277 = vmatprep.subr.mxu0 0.0
    %278 = vmatpush1.msra.mxu0 0.0
    %279 = vmatprep.subr.mxu0 0.0
    %280 = vmatpush1.msra.mxu0 0.0
    %281 = vmatprep.subr.mxu0 0.0
    %282 = vmatpush1.msra.mxu0 0.0
    %283 = vmatprep.subr.mxu0 0.0
    %284 = vmatpush1.msra.mxu0 0.0
    %285 = vmatprep.subr.mxu0 0.0
    %286 = vmatpush1.msra.mxu0 0.0
    %287 = vmatprep.subr.mxu0 0.0
    %288 = vmatpush1.msra.mxu0 0.0
    %289 = vmatprep.subr.mxu0 0.0
    %290 = vmatpush1.msra.mxu0 0.0
    %291 = vmatprep.subr.mxu0 0.0
    %292 = vmatpush1.msra.mxu0 0.0
    %293 = vmatprep.subr.mxu0 0.0
    %294 = vmatpush1.msra.mxu0 0.0
    %295 = vmatprep.subr.mxu0 0.0
    %296 = vmatpush1.msra.mxu0 0.0
    %297 = vmatprep.subr.mxu0 0.0
    %298 = vmatpush1.msra.mxu0 0.0
    %299 = vmatprep.subr.mxu0 0.0
    %300 = vmatpush1.msra.mxu0 0.0
    %301 = vmatprep.subr.mxu0 0.0
    %302 = vmatpush1.msra.mxu0 0.0
    %303 = vmatprep.subr.mxu0 0.0
    %304 = vmatpush1.msra.mxu0 0.0
    %305 = vmatprep.subr.mxu0 0.0
    %306 = vmatpush1.msra.mxu0 0.0
    %307 = vmatprep.subr.mxu0 0.0
    %308 = vmatpush1.msra.mxu0 0.0
    %309 = vmatprep.subr.mxu0 0.0
    %310 = vmatpush1.msra.mxu0 0.0
    %311 = vmatprep.subr.mxu0 0.0
    %312 = vmatpush1.msra.mxu0 0.0
    %313 = vmatprep.subr.mxu0 0.0
    %314 = vmatpush1.msra.mxu0 0.0
    %315 = vmatprep.subr.mxu0 0.0
    %316 = vmatpush1.msra.mxu0 0.0
    %317 = vmatprep.subr.mxu0 0.0
    %318 = vmatpush1.msra.mxu0 0.0
    %319 = vmatprep.subr.mxu0 0.0
    %320 = vmatpush1.msra.mxu0 0.0
    %321 = vmatprep.mubr.f32.mxu0 0.0
    %322 = vmatmul.mubr.f32.gmra.mrb[0].mxu0 %v255
    %v323 = vpop.f32.mrb[0].mxu0
    %v324 = vadd.f32 0.0, %v323
    %v325 = vpop.f32.mrb[0].mxu0
    %326 = vdwg.mxu0
    %v328 = vsel %vm253, %v240, 0
    %330 = vmatprep.subr.mxu0 0.0
    %331 = vmatpush1.msra.mxu0 %v245
    %332 = vmatprep.subr.mxu0 0.0
    %333 = vmatpush1.msra.mxu0 %v246
    %334 = vmatprep.subr.mxu0 0.0
    %335 = vmatpush1.msra.mxu0 %v247
    %336 = vmatprep.subr.mxu0 0.0
    %337 = vmatpush1.msra.mxu0 %v248
    %338 = vmatprep.subr.mxu0 0.0
    %339 = vmatpush1.msra.mxu0 0.0
    %340 = vmatprep.subr.mxu0 0.0
    %341 = vmatpush1.msra.mxu0 0.0
    %342 = vmatprep.subr.mxu0 0.0
    %343 = vmatpush1.msra.mxu0 0.0
    %344 = vmatprep.subr.mxu0 0.0
    %345 = vmatpush1.msra.mxu0 0.0
    %346 = vmatprep.subr.mxu0 0.0
    %347 = vmatpush1.msra.mxu0 0.0
    %348 = vmatprep.subr.mxu0 0.0
    %349 = vmatpush1.msra.mxu0 0.0
    %350 = vmatprep.subr.mxu0 0.0
    %351 = vmatpush1.msra.mxu0 0.0
    %352 = vmatprep.subr.mxu0 0.0
    %353 = vmatpush1.msra.mxu0 0.0
    %354 = vmatprep.subr.mxu0 0.0
    %355 = vmatpush1.msra.mxu0 0.0
    %356 = vmatprep.subr.mxu0 0.0
    %357 = vmatpush1.msra.mxu0 0.0
    %358 = vmatprep.subr.mxu0 0.0
    %359 = vmatpush1.msra.mxu0 0.0
    %360 = vmatprep.subr.mxu0 0.0
    %361 = vmatpush1.msra.mxu0 0.0
    %362 = vmatprep.subr.mxu0 0.0
    %363 = vmatpush1.msra.mxu0 0.0
    %364 = vmatprep.subr.mxu0 0.0
    %365 = vmatpush1.msra.mxu0 0.0
    %366 = vmatprep.subr.mxu0 0.0
    %367 = vmatpush1.msra.mxu0 0.0
    %368 = vmatprep.subr.mxu0 0.0
    %369 = vmatpush1.msra.mxu0 0.0
    %370 = vmatprep.subr.mxu0 0.0
    %371 = vmatpush1.msra.mxu0 0.0
    %372 = vmatprep.subr.mxu0 0.0
    %373 = vmatpush1.msra.mxu0 0.0
    %374 = vmatprep.subr.mxu0 0.0
    %375 = vmatpush1.msra.mxu0 0.0
    %376 = vmatprep.subr.mxu0 0.0
    %377 = vmatpush1.msra.mxu0 0.0
    %378 = vmatprep.subr.mxu0 0.0
    %379 = vmatpush1.msra.mxu0 0.0
    %380 = vmatprep.subr.mxu0 0.0
    %381 = vmatpush1.msra.mxu0 0.0
    %382 = vmatprep.subr.mxu0 0.0
    %383 = vmatpush1.msra.mxu0 0.0
    %384 = vmatprep.subr.mxu0 0.0
    %385 = vmatpush1.msra.mxu0 0.0
    %386 = vmatprep.subr.mxu0 0.0
    %387 = vmatpush1.msra.mxu0 0.0
    %388 = vmatprep.subr.mxu0 0.0
    %389 = vmatpush1.msra.mxu0 0.0
    %390 = vmatprep.subr.mxu0 0.0
    %391 = vmatpush1.msra.mxu0 0.0
    %392 = vmatprep.subr.mxu0 0.0
    %393 = vmatpush1.msra.mxu0 0.0
    %394 = vmatprep.mubr.f32.mxu0 0.0
    %395 = vmatmul.mubr.f32.gmra.mrb[0].mxu0 %v328
    %v396 = vpop.f32.mrb[0].mxu0
    %v397 = vadd.f32 %v324, %v396
    %v398 = vpop.f32.mrb[0].mxu0
    %399 = vdwg.mxu0
    %v400 = vld [vmem:[#allocation12] sm:$0x1]
    %v402 = vlaneseq
    %v403 = vshrl.u32 %v402, 7
    %v404 = vsub.s32 0, %v403
    %v405 = vrot.slane %v400, %v404
    %v407 = vadd.f32 %v397, %v405
    %v408 = vxor.u32 %v407, 2147483648
    %v409 = vmul.f32 %v408, 1.442695
    %v410 = vpow.pop %v409
    %v411 = vadd.f32 %v410, 1.0
    %v412 = vrcp.pop %v411
    %v413 = vmul.f32 1.0, %v412
    %v414 = vtanh.pop %v407
    %416 = vrot.lane.b32.xlu0 %v244, 32
    %v417 = vpop.permute.xlu0 %416
    %v419 = vmul.f32 %v413, %v417
    %421 = vrot.lane.b32.xlu0 %v414, 64
    %v422 = vpop.permute.xlu0 %421
    %v424 = vmul.f32 %v413, %v422
    %426 = vrot.lane.b32.xlu0 %v424, 32
    %v427 = vpop.permute.xlu0 %426
    %v429 = vadd.f32 %v419, %v427
    %v430 = vtanh.pop %v429
    %432 = vrot.lane.b32.xlu0 %v430, 64
    %v433 = vpop.permute.xlu0 %432
    %v435 = vmul.f32 %v413, %v433
    %437 = vrot.lane.b32.xlu0 %v435, 32
    %v438 = vpop.permute.xlu0 %437
    %440 = vst.msk [vmem:[#allocation2] sm:$0xff] %vm253, %v438
    %442 = vrot.lane.b32.xlu0 %v429, 96
    %v443 = vpop.permute.xlu0 %442
    %445 = vst.msk [vmem:[#allocation3] sm:$0xff] %vm253, %v443
    %s446 = scalar_lea.vmem [#allocation2], 8
    %v447 = vld [vmem:[%s446] sm:$0xff]
    %s448 = scalar_lea.vmem [#allocation3], 8
    %v449 = vld [vmem:[%s448] sm:$0xff]
    %v450 = vld [vmem:[#allocation13] sm:$0xff]
    %v451 = vld [vmem:[#allocation13 + $0x8] sm:$0xff]
    %v452 = vld [vmem:[#allocation13 + $0x10] sm:$0xff]
    %v453 = vld [vmem:[#allocation13 + $0x18] sm:$0xff]
    %v454 = vld [vmem:[#allocation15] sm:$0xff]
    %v455 = vld [vmem:[#allocation15 + $0x8] sm:$0xff]
    %v456 = vld [vmem:[#allocation15 + $0x10] sm:$0xff]
    %v457 = vld [vmem:[#allocation15 + $0x18] sm:$0xff]
    %v459 = vsel %vm253, %v447, 0
    %461 = vmatprep.subr.mxu0 0.0
    %462 = vmatpush1.msra.mxu0 %v454
    %463 = vmatprep.subr.mxu0 0.0
    %464 = vmatpush1.msra.mxu0 %v455
    %465 = vmatprep.subr.mxu0 0.0
    %466 = vmatpush1.msra.mxu0 %v456
    %467 = vmatprep.subr.mxu0 0.0
    %468 = vmatpush1.msra.mxu0 %v457
    %469 = vmatprep.subr.mxu0 0.0
    %470 = vmatpush1.msra.mxu0 0.0
    %471 = vmatprep.subr.mxu0 0.0
    %472 = vmatpush1.msra.mxu0 0.0
    %473 = vmatprep.subr.mxu0 0.0
    %474 = vmatpush1.msra.mxu0 0.0
    %475 = vmatprep.subr.mxu0 0.0
    %476 = vmatpush1.msra.mxu0 0.0
    %477 = vmatprep.subr.mxu0 0.0
    %478 = vmatpush1.msra.mxu0 0.0
    %479 = vmatprep.subr.mxu0 0.0
    %480 = vmatpush1.msra.mxu0 0.0
    %481 = vmatprep.subr.mxu0 0.0
    %482 = vmatpush1.msra.mxu0 0.0
    %483 = vmatprep.subr.mxu0 0.0
    %484 = vmatpush1.msra.mxu0 0.0
    %485 = vmatprep.subr.mxu0 0.0
    %486 = vmatpush1.msra.mxu0 0.0
    %487 = vmatprep.subr.mxu0 0.0
    %488 = vmatpush1.msra.mxu0 0.0
    %489 = vmatprep.subr.mxu0 0.0
    %490 = vmatpush1.msra.mxu0 0.0
    %491 = vmatprep.subr.mxu0 0.0
    %492 = vmatpush1.msra.mxu0 0.0
    %493 = vmatprep.subr.mxu0 0.0
    %494 = vmatpush1.msra.mxu0 0.0
    %495 = vmatprep.subr.mxu0 0.0
    %496 = vmatpush1.msra.mxu0 0.0
    %497 = vmatprep.subr.mxu0 0.0
    %498 = vmatpush1.msra.mxu0 0.0
    %499 = vmatprep.subr.mxu0 0.0
    %500 = vmatpush1.msra.mxu0 0.0
    %501 = vmatprep.subr.mxu0 0.0
    %502 = vmatpush1.msra.mxu0 0.0
    %503 = vmatprep.subr.mxu0 0.0
    %504 = vmatpush1.msra.mxu0 0.0
    %505 = vmatprep.subr.mxu0 0.0
    %506 = vmatpush1.msra.mxu0 0.0
    %507 = vmatprep.subr.mxu0 0.0
    %508 = vmatpush1.msra.mxu0 0.0
    %509 = vmatprep.subr.mxu0 0.0
    %510 = vmatpush1.msra.mxu0 0.0
    %511 = vmatprep.subr.mxu0 0.0
    %512 = vmatpush1.msra.mxu0 0.0
    %513 = vmatprep.subr.mxu0 0.0
    %514 = vmatpush1.msra.mxu0 0.0
    %515 = vmatprep.subr.mxu0 0.0
    %516 = vmatpush1.msra.mxu0 0.0
    %517 = vmatprep.subr.mxu0 0.0
    %518 = vmatpush1.msra.mxu0 0.0
    %519 = vmatprep.subr.mxu0 0.0
    %520 = vmatpush1.msra.mxu0 0.0
    %521 = vmatprep.subr.mxu0 0.0
    %522 = vmatpush1.msra.mxu0 0.0
    %523 = vmatprep.subr.mxu0 0.0
    %524 = vmatpush1.msra.mxu0 0.0
    %525 = vmatprep.mubr.f32.mxu0 0.0
    %526 = vmatmul.mubr.f32.gmra.mrb[0].mxu0 %v459
    %v527 = vpop.f32.mrb[0].mxu0
    %v528 = vadd.f32 0.0, %v527
    %v529 = vpop.f32.mrb[0].mxu0
    %530 = vdwg.mxu0
    %v531 = vsel %vm253, %v438, 0
    %533 = vmatprep.subr.mxu0 0.0
    %534 = vmatpush1.msra.mxu0 %v450
    %535 = vmatprep.subr.mxu0 0.0
    %536 = vmatpush1.msra.mxu0 %v451
    %537 = vmatprep.subr.mxu0 0.0
    %538 = vmatpush1.msra.mxu0 %v452
    %539 = vmatprep.subr.mxu0 0.0
    %540 = vmatpush1.msra.mxu0 %v453
    %541 = vmatprep.subr.mxu0 0.0
    %542 = vmatpush1.msra.mxu0 0.0
    %543 = vmatprep.subr.mxu0 0.0
    %544 = vmatpush1.msra.mxu0 0.0
    %545 = vmatprep.subr.mxu0 0.0
    %546 = vmatpush1.msra.mxu0 0.0
    %547 = vmatprep.subr.mxu0 0.0
    %548 = vmatpush1.msra.mxu0 0.0
    %549 = vmatprep.subr.mxu0 0.0
    %550 = vmatpush1.msra.mxu0 0.0
    %551 = vmatprep.subr.mxu0 0.0
    %552 = vmatpush1.msra.mxu0 0.0
    %553 = vmatprep.subr.mxu0 0.0
    %554 = vmatpush1.msra.mxu0 0.0
    %555 = vmatprep.subr.mxu0 0.0
    %556 = vmatpush1.msra.mxu0 0.0
    %557 = vmatprep.subr.mxu0 0.0
    %558 = vmatpush1.msra.mxu0 0.0
    %559 = vmatprep.subr.mxu0 0.0
    %560 = vmatpush1.msra.mxu0 0.0
    %561 = vmatprep.subr.mxu0 0.0
    %562 = vmatpush1.msra.mxu0 0.0
    %563 = vmatprep.subr.mxu0 0.0
    %564 = vmatpush1.msra.mxu0 0.0
    %565 = vmatprep.subr.mxu0 0.0
    %566 = vmatpush1.msra.mxu0 0.0
    %567 = vmatprep.subr.mxu0 0.0
    %568 = vmatpush1.msra.mxu0 0.0
    %569 = vmatprep.subr.mxu0 0.0
    %570 = vmatpush1.msra.mxu0 0.0
    %571 = vmatprep.subr.mxu0 0.0
    %572 = vmatpush1.msra.mxu0 0.0
    %573 = vmatprep.subr.mxu0 0.0
    %574 = vmatpush1.msra.mxu0 0.0
    %575 = vmatprep.subr.mxu0 0.0
    %576 = vmatpush1.msra.mxu0 0.0
    %577 = vmatprep.subr.mxu0 0.0
    %578 = vmatpush1.msra.mxu0 0.0
    %579 = vmatprep.subr.mxu0 0.0
    %580 = vmatpush1.msra.mxu0 0.0
    %581 = vmatprep.subr.mxu0 0.0
    %582 = vmatpush1.msra.mxu0 0.0
    %583 = vmatprep.subr.mxu0 0.0
    %584 = vmatpush1.msra.mxu0 0.0
    %585 = vmatprep.subr.mxu0 0.0
    %586 = vmatpush1.msra.mxu0 0.0
    %587 = vmatprep.subr.mxu0 0.0
    %588 = vmatpush1.msra.mxu0 0.0
    %589 = vmatprep.subr.mxu0 0.0
    %590 = vmatpush1.msra.mxu0 0.0
    %591 = vmatprep.subr.mxu0 0.0
    %592 = vmatpush1.msra.mxu0 0.0
    %593 = vmatprep.subr.mxu0 0.0
    %594 = vmatpush1.msra.mxu0 0.0
    %595 = vmatprep.subr.mxu0 0.0
    %596 = vmatpush1.msra.mxu0 0.0
    %597 = vmatprep.mubr.f32.mxu0 0.0
    %598 = vmatmul.mubr.f32.gmra.mrb[0].mxu0 %v531
    %v599 = vpop.f32.mrb[0].mxu0
    %v600 = vadd.f32 %v528, %v599
    %v601 = vpop.f32.mrb[0].mxu0
    %602 = vdwg.mxu0
    %v603 = vld [vmem:[%s9] sm:$0x1]
    %v605 = vlaneseq
    %v606 = vshrl.u32 %v605, 7
    %v607 = vsub.s32 0, %v606
    %v608 = vrot.slane %v603, %v607
    %v610 = vadd.f32 %v600, %v608
    %v611 = vxor.u32 %v610, 2147483648
    %v612 = vmul.f32 %v611, 1.442695
    %v613 = vpow.pop %v612
    %v614 = vadd.f32 %v613, 1.0
    %v615 = vrcp.pop %v614
    %v616 = vmul.f32 1.0, %v615
    %v617 = vtanh.pop %v610
    %619 = vrot.lane.b32.xlu0 %v449, 32
    %v620 = vpop.permute.xlu0 %619
    %v622 = vmul.f32 %v616, %v620
    %624 = vrot.lane.b32.xlu0 %v617, 64
    %v625 = vpop.permute.xlu0 %624
    %v627 = vmul.f32 %v616, %v625
    %629 = vrot.lane.b32.xlu0 %v627, 32
    %v630 = vpop.permute.xlu0 %629
    %v632 = vadd.f32 %v622, %v630
    %v633 = vtanh.pop %v632
    %635 = vrot.lane.b32.xlu0 %v633, 64
    %v636 = vpop.permute.xlu0 %635
    %v638 = vmul.f32 %v616, %v636
    %640 = vrot.lane.b32.xlu0 %v638, 32
    %v641 = vpop.permute.xlu0 %640
    %643 = vst.msk [vmem:[%s446] sm:$0xff] %vm253, %v641
    %645 = vrot.lane.b32.xlu0 %v632, 96
    %v646 = vpop.permute.xlu0 %645
    %648 = vst.msk [vmem:[%s448] sm:$0xff] %vm253, %v646
    %v649 = vld [vmem:[%s10] sm:$0xff]
    %v650 = vld [vmem:[%s10 + $0x8] sm:$0xff]
    %v651 = vld [vmem:[%s10 + $0x10] sm:$0xff]
    %v652 = vld [vmem:[%s10 + $0x18] sm:$0xff]
    %v653 = vld [vmem:[%s11] sm:$0x1]
    %v655 = vlaneseq
    %v656 = vshrl.u32 %v655, 7
    %v657 = vsub.s32 0, %v656
    %v658 = vrot.slane %v653, %v657
    %v660 = vsel %vm253, %v641, 0
    %662 = vmatprep.subr.mxu0 0.0
    %663 = vmatpush1.msra.mxu0 %v649
    %664 = vmatprep.subr.mxu0 0.0
    %665 = vmatpush1.msra.mxu0 %v650
    %666 = vmatprep.subr.mxu0 0.0
    %667 = vmatpush1.msra.mxu0 %v651
    %668 = vmatprep.subr.mxu0 0.0
    %669 = vmatpush1.msra.mxu0 %v652
    %670 = vmatprep.subr.mxu0 0.0
    %671 = vmatpush1.msra.mxu0 0.0
    %672 = vmatprep.subr.mxu0 0.0
    %673 = vmatpush1.msra.mxu0 0.0
    %674 = vmatprep.subr.mxu0 0.0
    %675 = vmatpush1.msra.mxu0 0.0
    %676 = vmatprep.subr.mxu0 0.0
    %677 = vmatpush1.msra.mxu0 0.0
    %678 = vmatprep.subr.mxu0 0.0
    %679 = vmatpush1.msra.mxu0 0.0
    %680 = vmatprep.subr.mxu0 0.0
    %681 = vmatpush1.msra.mxu0 0.0
    %682 = vmatprep.subr.mxu0 0.0
    %683 = vmatpush1.msra.mxu0 0.0
    %684 = vmatprep.subr.mxu0 0.0
    %685 = vmatpush1.msra.mxu0 0.0
    %686 = vmatprep.subr.mxu0 0.0
    %687 = vmatpush1.msra.mxu0 0.0
    %688 = vmatprep.subr.mxu0 0.0
    %689 = vmatpush1.msra.mxu0 0.0
    %690 = vmatprep.subr.mxu0 0.0
    %691 = vmatpush1.msra.mxu0 0.0
    %692 = vmatprep.subr.mxu0 0.0
    %693 = vmatpush1.msra.mxu0 0.0
    %694 = vmatprep.subr.mxu0 0.0
    %695 = vmatpush1.msra.mxu0 0.0
    %696 = vmatprep.subr.mxu0 0.0
    %697 = vmatpush1.msra.mxu0 0.0
    %698 = vmatprep.subr.mxu0 0.0
    %699 = vmatpush1.msra.mxu0 0.0
    %700 = vmatprep.subr.mxu0 0.0
    %701 = vmatpush1.msra.mxu0 0.0
    %702 = vmatprep.subr.mxu0 0.0
    %703 = vmatpush1.msra.mxu0 0.0
    %704 = vmatprep.subr.mxu0 0.0
    %705 = vmatpush1.msra.mxu0 0.0
    %706 = vmatprep.subr.mxu0 0.0
    %707 = vmatpush1.msra.mxu0 0.0
    %708 = vmatprep.subr.mxu0 0.0
    %709 = vmatpush1.msra.mxu0 0.0
    %710 = vmatprep.subr.mxu0 0.0
    %711 = vmatpush1.msra.mxu0 0.0
    %712 = vmatprep.subr.mxu0 0.0
    %713 = vmatpush1.msra.mxu0 0.0
    %714 = vmatprep.subr.mxu0 0.0
    %715 = vmatpush1.msra.mxu0 0.0
    %716 = vmatprep.subr.mxu0 0.0
    %717 = vmatpush1.msra.mxu0 0.0
    %718 = vmatprep.subr.mxu0 0.0
    %719 = vmatpush1.msra.mxu0 0.0
    %720 = vmatprep.subr.mxu0 0.0
    %721 = vmatpush1.msra.mxu0 0.0
    %722 = vmatprep.subr.mxu0 0.0
    %723 = vmatpush1.msra.mxu0 0.0
    %724 = vmatprep.subr.mxu0 0.0
    %725 = vmatpush1.msra.mxu0 0.0
    %726 = vmatprep.mubr.f32.mxu0 0.0
    %727 = vmatmul.mubr.f32.gmra.mrb[0].mxu0 %v660
    %v728 = vpop.f32.mrb[0].mxu0
    %v729 = vadd.f32 %v658, %v728
    %v730 = vpop.f32.mrb[0].mxu0
    %731 = vdwg.mxu0
    %732 = vst.msk [vmem:[#allocation16] sm:$0xff] %vm169, %v729
    // Predicated region
    $region82: #{decoder_forward.1} parent=1 // pred_check
      %p733 = pneg %p139
    $region83: #{decoder_forward.1} parent=1 // pred_check_branch
      %735 = sbr.rel (%p733) target = $region85
    $region84: #{decoder_forward.1} parent=1 // pred_region
      %v736 = vld [vmem:[#allocation2] sm:$0xff]
      %v737 = vld [vmem:[#allocation2 + $0x8] sm:$0xff]
      %738 = vst.msk [vmem:[#allocation17] sm:$0xff] %vm253, %v736
      %739 = vst.msk [vmem:[#allocation17 + $0x8] sm:$0xff] %vm253, %v737
      %v740 = vld [vmem:[#allocation3] sm:$0xff]
      %v741 = vld [vmem:[#allocation3 + $0x8] sm:$0xff]
      %742 = vst.msk [vmem:[#allocation19] sm:$0xff] %vm253, %v740
      %743 = vst.msk [vmem:[#allocation19 + $0x8] sm:$0xff] %vm253, %v741
    $region85: #{decoder_forward.1} parent=1 // pred_fallthru
      _
    // Predicated region
    $region86: #{decoder_forward.1} parent=1 // pred_check
      _
    $region87: #{decoder_forward.1} parent=1 // pred_check_branch
      %745 = sbr.rel (0) target = $region89
    $region88: #{decoder_forward.1} parent=1 // pred_region
      %s747 = ssub.s32 128, 128
      %748 = vsyncadd [#allocation6], %s747
      %s750 = sshll.u32 [#allocation16], 4
      %s751 = int_to_ptr.vmem [resolvable:$true] %s750
      %753 = dma.vmem_to_hbm [thread:$0]  %s751, 128, %s12, [#allocation6]
    $region89: #{decoder_forward.1} parent=1 // pred_fallthru
      _
    // Predicated region
    $region90: #{decoder_forward.1} parent=1 // pred_check
      _
    $region91: #{decoder_forward.1} parent=1 // pred_check_branch
      %755 = sbr.rel (0) target = $region93
    $region92: #{decoder_forward.1} parent=1 // pred_region
      %s757 = ssub.s32 256, 256
      %758 = vsyncadd [#allocation18], %s757
      %s759 = sshll.u32 [#allocation17], 4
      %s760 = int_to_ptr.vmem [resolvable:$true] %s759
      %765 = dma.vmem_to_hbm [thread:$0]  %s760, 256, %s13, [#allocation18], 128, 128, 8
    $region93: #{decoder_forward.1} parent=1 // pred_fallthru
      _
    // Predicated region
    $region94: #{decoder_forward.1} parent=1 // pred_check
      _
    $region95: #{decoder_forward.1} parent=1 // pred_check_branch
      %767 = sbr.rel (0) target = $region97
    $region96: #{decoder_forward.1} parent=1 // pred_region
      %s769 = ssub.s32 256, 256
      %770 = vsyncadd [#allocation18], %s769
      %s771 = sshll.u32 [#allocation19], 4
      %s772 = int_to_ptr.vmem [resolvable:$true] %s771
      %777 = dma.vmem_to_hbm [thread:$0]  %s772, 256, %s14, [#allocation18], 128, 128, 8
    $region97: #{decoder_forward.1} parent=1 // pred_fallthru
      _
    // Predicated region
    $region98: #{decoder_forward.1} parent=1 // pred_check
      _
    $region99: #{decoder_forward.1} parent=1 // pred_check_branch
      %779 = sbr.rel (0) target = $region101
    $region100: #{decoder_forward.1} parent=1 // pred_region
      %780 = dma.done [#allocation6], 128
    $region101: #{decoder_forward.1} parent=1 // pred_fallthru
      _
    // Predicated region
    $region102: #{decoder_forward.1} parent=1 // pred_check
      _
    $region103: #{decoder_forward.1} parent=1 // pred_check_branch
      %782 = sbr.rel (0) target = $region105
    $region104: #{decoder_forward.1} parent=1 // pred_region
      %783 = dma.done [#allocation18], 256
    $region105: #{decoder_forward.1} parent=1 // pred_fallthru
      _
    // Predicated region
    $region106: #{decoder_forward.1} parent=1 // pred_check
      _
    $region107: #{decoder_forward.1} parent=1 // pred_check_branch
      %785 = sbr.rel (0) target = $region109
    $region108: #{decoder_forward.1} parent=1 // pred_region
      %786 = dma.done [#allocation18], 256
    $region109: #{decoder_forward.1} parent=1 // pred_fallthru
      _
    %787 = vsyncpa [#allocation5], 1
    %788 = vsyncpa [#allocation8], 1
    %789 = vsyncpa [#allocation11], 1
    %790 = vsyncpa [#allocation14], 1
    %791 = vsyncpa [#allocation6], 1
    %792 = vsyncpa [#allocation18], 1

</llo_original>
